<compile_context>
chip_gen: v6e
topology: v6e:2x2x1
jax: 0.10.0
libtpu: 0.0.40
codegen_flags: <defaults>
</compile_context>

<pallas_src>
import functools

import jax
import jax.numpy as jnp
from jax import lax
from jax.experimental import pallas as pl
from jax.experimental.pallas import tpu as pltpu

input_size = 1
hidden_size1 = 15
hidden_size2 = 15
hidden_size3 = 15
hidden_size4 = 15
num_classes = 1

PAD_F = 16              # features padded 15 -> 16 (sublane-friendly, zeros are inert)
CHUNK = 512             # lanes processed per inner-loop iteration (4 lane-tiles)
DEFAULT_TILE_B = 32768  # rows per grid step; sweep 16K/32K/64K per generation


def _round_up(a, m):
    return ((a + m - 1) // m) * m


def mlp_kernel(x_ref, w_ref, v_ref, o_ref, *, chunk, n_chunks, unroll):
    # Parameters: full-array blocks with constant index_maps -> VMEM-resident
    # across grid steps; hoisted loads outside the chunk loop.
    W = w_ref[...]                      # (3, 16, 16): zero-padded w2, w3, w4
    w2, w3, w4 = W[0], W[1], W[2]
    V = v_ref[...]                      # (16, 8) packed parameter columns
    w1c = V[:, 0:1]                     # fc1 weight column (16, 1)
    b1c = V[:, 1:2]
    b2c = V[:, 2:3]
    b3c = V[:, 3:4]
    b4c = V[:, 4:5]
    w5c = V[:, 5:6]                     # fc5 weight column (16, 1)
    b5 = V[0:1, 6:7]                    # fc5 bias scalar   (1, 1)

    def body(c, carry):
        start = pl.multiple_of(c * chunk, chunk)
        x = x_ref[:, pl.ds(start, chunk)]                         # (1, chunk)
        # fc1 + relu: K=1 -> outer product on the VPU (no MXU push).
        h = jnp.maximum(w1c * x + b1c, 0.0)                       # (16, chunk)
        # fc2..fc4 + relu: (16,16) @ (16,chunk) lane-dense MXU matmuls.
        h = jnp.maximum(
            jnp.dot(w2, h, preferred_element_type=jnp.float32) + b2c, 0.0)
        h = jnp.maximum(
            jnp.dot(w3, h, preferred_element_type=jnp.float32) + b3c, 0.0)
        h = jnp.maximum(
            jnp.dot(w4, h, preferred_element_type=jnp.float32) + b4c, 0.0)
        # fc5: N=1 -> sublane reduction (VPU mul + XLU sum), no MXU.
        out = jnp.sum(w5c * h, axis=0, keepdims=True) + b5        # (1, chunk)
        o_ref[:, pl.ds(start, chunk)] = out.astype(o_ref.dtype)
        return carry

    lax.fori_loop(0, n_chunks, body, 0, unroll=unroll)


def pack_params(params):
    """Pack PyTorch-layout params ((out,in) weights, (out,) biases) into
    two padded slabs consumed by the kernel (padding entries are zero, so
    the padded feature row stays identically zero through the ReLU chain)."""
    w1, b1, w2, b2, w3, b3, w4, b4, w5, b5 = params
    W = jnp.zeros((3, PAD_F, PAD_F), jnp.float32)
    W = W.at[0, :hidden_size2, :hidden_size1].set(w2)
    W = W.at[1, :hidden_size3, :hidden_size2].set(w3)
    W = W.at[2, :hidden_size4, :hidden_size3].set(w4)
    V = jnp.zeros((PAD_F, 8), jnp.float32)
    V = V.at[:hidden_size1, 0].set(w1[:, 0])
    V = V.at[:hidden_size1, 1].set(b1)
    V = V.at[:hidden_size2, 2].set(b2)
    V = V.at[:hidden_size3, 3].set(b3)
    V = V.at[:hidden_size4, 4].set(b4)
    V = V.at[:hidden_size4, 5].set(w5[0, :])
    V = V.at[0, 6].set(b5[0])
    return W, V


def net_forward(x, packed, tile_b=DEFAULT_TILE_B):
    """x: (B, input_size) f32. packed: (W_slab, V_slab) from pack_params.
    Returns (B, num_classes) f32."""
    W, V = packed
    B, in_f = x.shape
    assert in_f == input_size == 1, "kernel is specialized to input_size == 1"

    # Tile: multiple of CHUNK, capped at the requested size, shrunk for small B.
    tile_b = max(CHUNK, min(_round_up(tile_b, CHUNK), _round_up(B, CHUNK)))
    n_tiles = pl.cdiv(B, tile_b)
    n_chunks = tile_b // CHUNK
    unroll = min(4, n_chunks)

    # (B, 1) -> (1, B) is a pure reshape (no HBM pass) since input_size == 1.
    x_row = x.reshape(1, B)
    if B < tile_b:
        # Tiny batch: pad up to one tile (a few KiB), slice the output after.
        x_row = jnp.pad(x_row, ((0, 0), (0, tile_b - B)))
        out_cols = tile_b
    else:
        # Large batch: no wrapper pad/slice. The ragged last block hangs off
        # the array; Pallas masks the out-of-bounds writes, and OOB reads only
        # feed lanes whose outputs are discarded (lane-wise independent math).
        out_cols = B

    kern = functools.partial(mlp_kernel, chunk=CHUNK, n_chunks=n_chunks,
                             unroll=unroll)
    out_row = pl.pallas_call(
        kern,
        out_shape=jax.ShapeDtypeStruct((1, out_cols), jnp.float32),
        grid=(n_tiles,),
        in_specs=[
            pl.BlockSpec((1, tile_b), lambda i: (0, i)),
            pl.BlockSpec(W.shape, lambda i: (0, 0, 0)),   # VMEM-resident slab
            pl.BlockSpec(V.shape, lambda i: (0, 0)),      # VMEM-resident slab
        ],
        out_specs=pl.BlockSpec((1, tile_b), lambda i: (0, i)),
        compiler_params=pltpu.CompilerParams(
            # Footprint is tiny (double-buffered (1, tile_b) x/out + <4 KiB of
            # params), so the default scoped VMEM limit is plenty on all of
            # v5e/v6e/v7x; grid stays >=2 steps for large B -> megacore on v7x.
            dimension_semantics=("parallel",),
        ),
    )(x_row, W, V)

    if out_cols != B:
        out_row = out_row[:, :B]
    # (1, B) -> (B, 1) is again a pure reshape since num_classes == 1.
    return out_row.reshape(B, num_classes)


def init_params(key):
    """Deterministic init mimicking nn.Linear (uniform +-1/sqrt(fan_in)).
    Weights stored (out_features, in_features), biases (out_features,)."""
    dims = [input_size, hidden_size1, hidden_size2, hidden_size3,
            hidden_size4, num_classes]
    params = []
    keys = jax.random.split(key, 2 * (len(dims) - 1))
    for li, (fan_in, fan_out) in enumerate(zip(dims[:-1], dims[1:])):
        bound = 1.0 / (fan_in ** 0.5)
        w = jax.random.uniform(keys[2 * li], (fan_out, fan_in),
                               minval=-bound, maxval=bound, dtype=jnp.float32)
        b = jax.random.uniform(keys[2 * li + 1], (fan_out,),
                               minval=-bound, maxval=bound, dtype=jnp.float32)
        params += [w, b]
    return tuple(params)


def net_forward_ref(x, params):
    w1, b1, w2, b2, w3, b3, w4, b4, w5, b5 = params
    h = jnp.maximum(x @ w1.T + b1, 0.0)
    h = jnp.maximum(h @ w2.T + b2, 0.0)
    h = jnp.maximum(h @ w3.T + b3, 0.0)
    h = jnp.maximum(h @ w4.T + b4, 0.0)
    return h @ w5.T + b5


if __name__ == "__main__":
    key = jax.random.PRNGKey(0)
    pkey, xkey = jax.random.split(key)
    params = init_params(pkey)
    packed = pack_params(params)

    # Small correctness check (single padded tile path).
    batch = 8
    x = jax.random.normal(xkey, (batch, input_size), dtype=jnp.float32)
    out = jax.block_until_ready(net_forward(x, packed))
    ref = net_forward_ref(x, params)
    assert out.shape == (batch, num_classes), out.shape
    assert jnp.allclose(out, ref, atol=1e-5, rtol=1e-5)

    # Ragged multi-tile batch: exercises the masked last block (no wrapper pad).
    xb = jax.random.normal(xkey, (1000, input_size), dtype=jnp.float32)
    outb = jax.block_until_ready(net_forward(xb, packed, tile_b=512))
    refb = net_forward_ref(xb, params)
    assert outb.shape == (1000, num_classes)
    assert jnp.allclose(outb, refb, atol=1e-5, rtol=1e-5)

    print("KERNEL_OK")
</pallas_src>

<mosaic_0001>
module attributes {stable_mosaic.version = 11 : i64} {
  func.func @mlp_kernel(%arg0: i32, %arg1: memref<1x512xf32, #tpu.memory_space<vmem>>, %arg2: memref<3x16x16xf32, #tpu.memory_space<vmem>>, %arg3: memref<16x8xf32, #tpu.memory_space<vmem>>, %arg4: memref<1x512xf32, #tpu.memory_space<vmem>>) attributes {dimension_semantics = [#tpu.dimension_semantics<parallel>], iteration_bounds = array<i64: 1>, scalar_prefetch = 0 : i64, scratch_operands = 0 : i64, tpu.core_type = #tpu.core_type<tc>, window_params = [{transform_indices = @transform_0, window_bounds = array<i64: 1, 512>}, {pipeline_mode = #tpu.pipeline_mode<synchronous>, transform_indices = @transform_1, window_bounds = array<i64: 3, 16, 16>}, {pipeline_mode = #tpu.pipeline_mode<synchronous>, transform_indices = @transform_2, window_bounds = array<i64: 16, 8>}, {transform_indices = @transform_3, window_bounds = array<i64: 1, 512>}]} {
    %c0 = arith.constant 0 : index
    %c0_0 = arith.constant 0 : index
    %c0_1 = arith.constant 0 : index
    %0 = vector.load %arg2[%c0, %c0_0, %c0_1] : memref<3x16x16xf32, #tpu.memory_space<vmem>>, vector<3x16x16xf32>
    %1 = vector.extract_strided_slice %0 {offsets = [0, 0, 0], sizes = [1, 16, 16], strides = [1, 1, 1]} : vector<3x16x16xf32> to vector<1x16x16xf32>
    %2 = vector.shape_cast %1 : vector<1x16x16xf32> to vector<16x16xf32>
    %3 = vector.extract_strided_slice %0 {offsets = [1, 0, 0], sizes = [1, 16, 16], strides = [1, 1, 1]} : vector<3x16x16xf32> to vector<1x16x16xf32>
    %4 = vector.shape_cast %3 : vector<1x16x16xf32> to vector<16x16xf32>
    %5 = vector.extract_strided_slice %0 {offsets = [2, 0, 0], sizes = [1, 16, 16], strides = [1, 1, 1]} : vector<3x16x16xf32> to vector<1x16x16xf32>
    %6 = vector.shape_cast %5 : vector<1x16x16xf32> to vector<16x16xf32>
    %c0_2 = arith.constant 0 : index
    %c0_3 = arith.constant 0 : index
    %7 = vector.load %arg3[%c0_2, %c0_3] : memref<16x8xf32, #tpu.memory_space<vmem>>, vector<16x8xf32>
    %8 = vector.extract_strided_slice %7 {offsets = [0, 0], sizes = [16, 1], strides = [1, 1]} : vector<16x8xf32> to vector<16x1xf32>
    %9 = vector.extract_strided_slice %7 {offsets = [0, 1], sizes = [16, 1], strides = [1, 1]} : vector<16x8xf32> to vector<16x1xf32>
    %10 = vector.extract_strided_slice %7 {offsets = [0, 2], sizes = [16, 1], strides = [1, 1]} : vector<16x8xf32> to vector<16x1xf32>
    %11 = vector.extract_strided_slice %7 {offsets = [0, 3], sizes = [16, 1], strides = [1, 1]} : vector<16x8xf32> to vector<16x1xf32>
    %12 = vector.extract_strided_slice %7 {offsets = [0, 4], sizes = [16, 1], strides = [1, 1]} : vector<16x8xf32> to vector<16x1xf32>
    %13 = vector.extract_strided_slice %7 {offsets = [0, 5], sizes = [16, 1], strides = [1, 1]} : vector<16x8xf32> to vector<16x1xf32>
    %14 = vector.extract_strided_slice %7 {offsets = [0, 6], sizes = [1, 1], strides = [1, 1]} : vector<16x8xf32> to vector<1x1xf32>
    %c0_i32 = arith.constant 0 : i32
    %c512_i32 = arith.constant 512 : i32
    %15 = arith.muli %c0_i32, %c512_i32 : i32
    %16 = tpu.assume_multiple %15, 512 : i32
    %c0_4 = arith.constant 0 : index
    %17 = arith.index_cast %16 : i32 to index
    %18 = vector.load %arg1[%c0_4, %17] : memref<1x512xf32, #tpu.memory_space<vmem>>, vector<1x512xf32>
    %19 = vector.broadcast %8 : vector<16x1xf32> to vector<16x512xf32>
    %20 = vector.broadcast %18 : vector<1x512xf32> to vector<16x512xf32>
    %21 = arith.mulf %19, %20 : vector<16x512xf32>
    %22 = vector.broadcast %9 : vector<16x1xf32> to vector<16x512xf32>
    %23 = arith.addf %21, %22 : vector<16x512xf32>
    %cst = arith.constant 0.000000e+00 : f32
    %24 = vector.broadcast %cst : f32 to vector<16x512xf32>
    %25 = arith.maximumf %23, %24 : vector<16x512xf32>
    %cst_5 = arith.constant dense<0.000000e+00> : vector<16x512xf32>
    %26 = tpu.matmul %2, %25, %cst_5 {dimension_numbers = #tpu.dot_dimension_numbers<[1], [0], [0], [1], [0, 0, 1, 1], [], []>} : vector<16x16xf32>, vector<16x512xf32>, vector<16x512xf32> -> vector<16x512xf32>
    %27 = vector.broadcast %10 : vector<16x1xf32> to vector<16x512xf32>
    %28 = arith.addf %26, %27 : vector<16x512xf32>
    %cst_6 = arith.constant 0.000000e+00 : f32
    %29 = vector.broadcast %cst_6 : f32 to vector<16x512xf32>
    %30 = arith.maximumf %28, %29 : vector<16x512xf32>
    %cst_7 = arith.constant dense<0.000000e+00> : vector<16x512xf32>
    %31 = tpu.matmul %4, %30, %cst_7 {dimension_numbers = #tpu.dot_dimension_numbers<[1], [0], [0], [1], [0, 0, 1, 1], [], []>} : vector<16x16xf32>, vector<16x512xf32>, vector<16x512xf32> -> vector<16x512xf32>
    %32 = vector.broadcast %11 : vector<16x1xf32> to vector<16x512xf32>
    %33 = arith.addf %31, %32 : vector<16x512xf32>
    %cst_8 = arith.constant 0.000000e+00 : f32
    %34 = vector.broadcast %cst_8 : f32 to vector<16x512xf32>
    %35 = arith.maximumf %33, %34 : vector<16x512xf32>
    %cst_9 = arith.constant dense<0.000000e+00> : vector<16x512xf32>
    %36 = tpu.matmul %6, %35, %cst_9 {dimension_numbers = #tpu.dot_dimension_numbers<[1], [0], [0], [1], [0, 0, 1, 1], [], []>} : vector<16x16xf32>, vector<16x512xf32>, vector<16x512xf32> -> vector<16x512xf32>
    %37 = vector.broadcast %12 : vector<16x1xf32> to vector<16x512xf32>
    %38 = arith.addf %36, %37 : vector<16x512xf32>
    %cst_10 = arith.constant 0.000000e+00 : f32
    %39 = vector.broadcast %cst_10 : f32 to vector<16x512xf32>
    %40 = arith.maximumf %38, %39 : vector<16x512xf32>
    %41 = vector.broadcast %13 : vector<16x1xf32> to vector<16x512xf32>
    %42 = arith.mulf %41, %40 : vector<16x512xf32>
    %cst_11 = arith.constant dense<0.000000e+00> : vector<512xf32>
    %43 = vector.multi_reduction <add>, %42, %cst_11 [0] : vector<16x512xf32> to vector<512xf32>
    %44 = vector.shape_cast %43 : vector<512xf32> to vector<1x512xf32>
    %45 = vector.broadcast %14 : vector<1x1xf32> to vector<1x512xf32>
    %46 = arith.addf %44, %45 : vector<1x512xf32>
    %c0_12 = arith.constant 0 : index
    %47 = arith.index_cast %16 : i32 to index
    %48 = vector.load %arg4[%c0_12, %47] : memref<1x512xf32, #tpu.memory_space<vmem>>, vector<1x512xf32>
    tpu.vector_store %arg4[%c0_12, %47], %46 {strides = array<i32>} : memref<1x512xf32, #tpu.memory_space<vmem>>, vector<1x512xf32>,
    %c1_i32 = arith.constant 1 : i32
    return
  }
  func.func @transform_0(%arg0: i32) -> (i32, i32) {
    %c0_i32 = arith.constant 0 : i32
    %c0_i32_0 = arith.constant 0 : i32
    return %c0_i32, %arg0 : i32, i32
  }
  func.func @transform_1(%arg0: i32) -> (i32, i32, i32) {
    %c0_i32 = arith.constant 0 : i32
    %c0_i32_0 = arith.constant 0 : i32
    %c0_i32_1 = arith.constant 0 : i32
    %c0_i32_2 = arith.constant 0 : i32
    return %c0_i32, %c0_i32_0, %c0_i32_1 : i32, i32, i32
  }
  func.func @transform_2(%arg0: i32) -> (i32, i32) {
    %c0_i32 = arith.constant 0 : i32
    %c0_i32_0 = arith.constant 0 : i32
    %c0_i32_1 = arith.constant 0 : i32
    return %c0_i32, %c0_i32_0 : i32, i32
  }
  func.func @transform_3(%arg0: i32) -> (i32, i32) {
    %c0_i32 = arith.constant 0 : i32
    %c0_i32_0 = arith.constant 0 : i32
    return %c0_i32, %arg0 : i32, i32
  }
}

</mosaic_0001>

<llo_original>
// kernel: tpu_custom_call.1
$region0: #{tpu_custom_call.1}
  #allocation0 [shape = 'u32[]', space=smem, size = 0x4, offset = 0x4, fixed_abs, tag = 'smem constant byte address 0x4 - core index']
  #allocation1 [shape = 'u32[144,128]{1,0:T(1,128)}', space=vmem, size = 0x12000, scoped, tag = 'internal scratch']
  %s0 = inlined_call_operand.vmem [shape: f32[1,512], index: 0, kind: input, shape index: {}]
  %s1 = inlined_call_operand.hbm [shape: f32[3,16,16], index: 1, kind: input, shape index: {}]
  %s2 = inlined_call_operand.vmem [shape: f32[16,8], index: 2, kind: input, shape index: {}]
  %s3 = inlined_call_operand.hbm [shape: f32[1,512], index: 3, kind: output, shape index: {}]
  %s4 = sld [smem:[#allocation0]]
  $region26: #{tpu_custom_call.1} parent=0
    _
  %s6 = ssub.s32 1, %s4
  %s7 = scalar_select 0, %s6, %s4
  $region1: #{tpu_custom_call.1} parent=0
    #allocation2 [shape = 'u8[24576]{0}', space=vmem, size = 0x6000, scoped, tag = 'input window, operand 1, single buffered']
    #allocation3 [shape = 's32[1]{0}', space=sflag, size = 0x4, scoped, tag = 'scoped memory for tpu_custom_call.1']
    #allocation4 [shape = 's32[1]{0}', space=sflag, size = 0x4, scoped, tag = 'scoped memory for tpu_custom_call.1']
    #allocation5 [shape = 'u8[2048]{0}', space=vmem, size = 0x800, scoped, tag = 'output window, operand 0, single buffered']
    %8 = vsyncpa [#allocation3], 0
    %9 = vsyncpa [#allocation4], 0
    // Predicated region
    $region2: #{tpu_custom_call.1} parent=1 // pred_check
      _
    $region3: #{tpu_custom_call.1} parent=1 // pred_check_branch
      %11 = sbr.rel (0) target = $region5
    $region4: #{tpu_custom_call.1} parent=1 // pred_region
      _
    $region5: #{tpu_custom_call.1} parent=1 // pred_fallthru
      _
    // Predicated region
    $region6: #{tpu_custom_call.1} parent=1 // pred_check
      _
    $region7: #{tpu_custom_call.1} parent=1 // pred_check_branch
      %13 = sbr.rel (0) target = $region9
    $region8: #{tpu_custom_call.1} parent=1 // pred_region
      %s15 = ssub.s32 768, 768
      %16 = vsyncadd [#allocation3], %s15
      %s17 = sshll.u32 [#allocation2], 4
      %s18 = int_to_ptr.vmem [resolvable:$true] %s17
      %23 = dma.hbm_to_vmem [thread:$0]  %s1, 768, %s18, [#allocation3], 128, 128, 8
    $region9: #{tpu_custom_call.1} parent=1 // pred_fallthru
      _
    // Predicated region
    $region10: #{tpu_custom_call.1} parent=1 // pred_check
      _
    $region11: #{tpu_custom_call.1} parent=1 // pred_check_branch
      %25 = sbr.rel (0) target = $region13
    $region12: #{tpu_custom_call.1} parent=1 // pred_region
      _
    $region13: #{tpu_custom_call.1} parent=1 // pred_fallthru
      _
    // Predicated region
    $region14: #{tpu_custom_call.1} parent=1 // pred_check
      _
    $region15: #{tpu_custom_call.1} parent=1 // pred_check_branch
      %27 = sbr.rel (0) target = $region17
    $region16: #{tpu_custom_call.1} parent=1 // pred_region
      %28 = dma.done [#allocation3], 768
    $region17: #{tpu_custom_call.1} parent=1 // pred_fallthru
      _
    %v29 = vld [vmem:[#allocation2] sm:$0xff]
    %v30 = vld [vmem:[#allocation2 + $0x8] sm:$0xff]
    %v31 = vld [vmem:[#allocation2 + $0x10] sm:$0xff]
    %v32 = vld [vmem:[#allocation2 + $0x18] sm:$0xff]
    %v33 = vld [vmem:[#allocation2 + $0x20] sm:$0xff]
    %v34 = vld [vmem:[#allocation2 + $0x28] sm:$0xff]
    %v35 = vld [vmem:[%s2] sm:$0xff]
    %v36 = vld [vmem:[%s2 + $0x8] sm:$0xff]
    %v37 = vld [vmem:[%s0] sm:$0xf]
    %39 = vset.pattern.permute.xlu0 0
    %40 = vperm.xlu0 %39, %v35
    %v41 = vpop.permute.xlu0 %40
    %44 = vset.pattern.permute.xlu0 0
    %45 = vperm.xlu0 %44, %v36
    %v46 = vpop.permute.xlu0 %45
    %v49 = vlaneseq
    %v50 = vshrl.u32 %v49, 7
    %v51 = vsub.s32 0, %v50
    %v52 = vrot.slane %v37, %v51
    %v53 = vlaneseq
    %v54 = vshrl.u32 %v53, 7
    %v55 = vsub.s32 1, %v54
    %v56 = vrot.slane %v37, %v55
    %v57 = vlaneseq
    %v58 = vshrl.u32 %v57, 7
    %v59 = vsub.s32 2, %v58
    %v60 = vrot.slane %v37, %v59
    %v61 = vlaneseq
    %v62 = vshrl.u32 %v61, 7
    %v63 = vsub.s32 3, %v62
    %v64 = vrot.slane %v37, %v63
    %v69 = vmul.f32 %v41, %v52
    %v70 = vmul.f32 %v41, %v56
    %v71 = vmul.f32 %v41, %v60
    %v72 = vmul.f32 %v41, %v64
    %v73 = vmul.f32 %v46, %v52
    %v74 = vmul.f32 %v46, %v56
    %v75 = vmul.f32 %v46, %v60
    %v76 = vmul.f32 %v46, %v64
    %77 = vset.pattern.permute.xlu0 1
    %78 = vperm.xlu0 %77, %v35
    %v79 = vpop.permute.xlu0 %78
    %81 = vset.pattern.permute.xlu0 1
    %82 = vperm.xlu0 %81, %v36
    %v83 = vpop.permute.xlu0 %82
    %v85 = vadd.f32 %v69, %v79
    %v86 = vadd.f32 %v70, %v79
    %v87 = vadd.f32 %v71, %v79
    %v88 = vadd.f32 %v72, %v79
    %v89 = vadd.f32 %v73, %v83
    %v90 = vadd.f32 %v74, %v83
    %v91 = vadd.f32 %v75, %v83
    %v92 = vadd.f32 %v76, %v83
    %v93 = vmax.f32 %v85, 0.0
    %v94 = vmax.f32 %v86, 0.0
    %v95 = vmax.f32 %v87, 0.0
    %v96 = vmax.f32 %v88, 0.0
    %v97 = vmax.f32 %v89, 0.0
    %v98 = vmax.f32 %v90, 0.0
    %v99 = vmax.f32 %v91, 0.0
    %v100 = vmax.f32 %v92, 0.0
    %101 = vset.pattern.permute.xlu0 2
    %102 = vperm.xlu0 %101, %v35
    %v103 = vpop.permute.xlu0 %102
    %105 = vset.pattern.permute.xlu0 2
    %106 = vperm.xlu0 %105, %v36
    %v107 = vpop.permute.xlu0 %106
    %vm109 = vcmask 130048
    %v111 = vsel %vm109, %v29, 0
    %v114 = vsel %vm109, %v30, 0
    %116 = vmatprep.subr.mxu0 0.0
    %117 = vmatpush1.msra.mxu0 0.0
    %118 = vmatprep.subr.mxu0 0.0
    %119 = vmatpush1.msra.mxu0 0.0
    %120 = vmatprep.subr.mxu0 0.0
    %121 = vmatpush1.msra.mxu0 0.0
    %122 = vmatprep.subr.mxu0 0.0
    %123 = vmatpush1.msra.mxu0 0.0
    %124 = vmatprep.subr.mxu0 0.0
    %125 = vmatpush1.msra.mxu0 0.0
    %126 = vmatprep.subr.mxu0 0.0
    %127 = vmatpush1.msra.mxu0 0.0
    %128 = vmatprep.subr.mxu0 0.0
    %129 = vmatpush1.msra.mxu0 0.0
    %130 = vmatprep.subr.mxu0 0.0
    %131 = vmatpush1.msra.mxu0 0.0
    %132 = vmatprep.subr.mxu0 0.0
    %133 = vmatpush1.msra.mxu0 0.0
    %134 = vmatprep.subr.mxu0 0.0
    %135 = vmatpush1.msra.mxu0 0.0
    %136 = vmatprep.subr.mxu0 0.0
    %137 = vmatpush1.msra.mxu0 0.0
    %138 = vmatprep.subr.mxu0 0.0
    %139 = vmatpush1.msra.mxu0 0.0
    %140 = vmatprep.subr.mxu0 0.0
    %141 = vmatpush1.msra.mxu0 0.0
    %142 = vmatprep.subr.mxu0 0.0
    %143 = vmatpush1.msra.mxu0 0.0
    %144 = vmatprep.subr.mxu0 %v98
    %145 = vmatpush1.msra.mxu0 %v97
    %146 = vmatprep.subr.mxu0 %v94
    %147 = vmatpush1.msra.mxu0 %v93
    %148 = vmatprep.subr.mxu0 0.0
    %149 = vmatpush2.msra.mxu0 0.0
    %150 = vmatprep.subr.mxu0 0.0
    %151 = vmatpush2.msra.mxu0 0.0
    %152 = vmatprep.subr.mxu0 0.0
    %153 = vmatpush2.msra.mxu0 0.0
    %154 = vmatprep.subr.mxu0 0.0
    %155 = vmatpush2.msra.mxu0 0.0
    %156 = vmatprep.subr.mxu0 0.0
    %157 = vmatpush2.msra.mxu0 0.0
    %158 = vmatprep.subr.mxu0 0.0
    %159 = vmatpush2.msra.mxu0 0.0
    %160 = vmatprep.subr.mxu0 0.0
    %161 = vmatpush2.msra.mxu0 0.0
    %162 = vmatprep.subr.mxu0 0.0
    %163 = vmatpush2.msra.mxu0 0.0
    %164 = vmatprep.subr.mxu0 0.0
    %165 = vmatpush2.msra.mxu0 0.0
    %166 = vmatprep.subr.mxu0 0.0
    %167 = vmatpush2.msra.mxu0 0.0
    %168 = vmatprep.subr.mxu0 0.0
    %169 = vmatpush2.msra.mxu0 0.0
    %170 = vmatprep.subr.mxu0 0.0
    %171 = vmatpush2.msra.mxu0 0.0
    %172 = vmatprep.subr.mxu0 0.0
    %173 = vmatpush2.msra.mxu0 0.0
    %174 = vmatprep.subr.mxu0 0.0
    %175 = vmatpush2.msra.mxu0 0.0
    %176 = vmatprep.subr.mxu0 0.0
    %177 = vmatpush2.msra.mxu0 0.0
    %178 = vmatprep.subr.mxu0 0.0
    %179 = vmatpush2.msra.mxu0 0.0
    %180 = vmatprep.mubr.f32.mxu0 0.0
    %181 = vmatmul.mubr.f32.gmra.mxu0 %v111
    %v182 = vpop.f32.mrf.mxu0
    %v183 = vadd.f32 %v103, %v182
    %v184 = vpop.f32.mrf.mxu0
    %v185 = vadd.f32 %v103, %v184
    %186 = vmatprep.mubr.f32.mxu0 0.0
    %187 = vmatmul.mubr.f32.gmra.mxu0 %v114
    %v188 = vpop.f32.mrf.mxu0
    %v189 = vadd.f32 %v107, %v188
    %v190 = vpop.f32.mrf.mxu0
    %v191 = vadd.f32 %v107, %v190
    %192 = vdwg.mxu0
    %193 = vmatprep.subr.mxu0 0.0
    %194 = vmatpush1.msra.mxu0 0.0
    %195 = vmatprep.subr.mxu0 0.0
    %196 = vmatpush1.msra.mxu0 0.0
    %197 = vmatprep.subr.mxu0 0.0
    %198 = vmatpush1.msra.mxu0 0.0
    %199 = vmatprep.subr.mxu0 0.0
    %200 = vmatpush1.msra.mxu0 0.0
    %201 = vmatprep.subr.mxu0 0.0
    %202 = vmatpush1.msra.mxu0 0.0
    %203 = vmatprep.subr.mxu0 0.0
    %204 = vmatpush1.msra.mxu0 0.0
    %205 = vmatprep.subr.mxu0 0.0
    %206 = vmatpush1.msra.mxu0 0.0
    %207 = vmatprep.subr.mxu0 0.0
    %208 = vmatpush1.msra.mxu0 0.0
    %209 = vmatprep.subr.mxu0 0.0
    %210 = vmatpush1.msra.mxu0 0.0
    %211 = vmatprep.subr.mxu0 0.0
    %212 = vmatpush1.msra.mxu0 0.0
    %213 = vmatprep.subr.mxu0 0.0
    %214 = vmatpush1.msra.mxu0 0.0
    %215 = vmatprep.subr.mxu0 0.0
    %216 = vmatpush1.msra.mxu0 0.0
    %217 = vmatprep.subr.mxu0 0.0
    %218 = vmatpush1.msra.mxu0 0.0
    %219 = vmatprep.subr.mxu0 0.0
    %220 = vmatpush1.msra.mxu0 0.0
    %221 = vmatprep.subr.mxu0 %v100
    %222 = vmatpush1.msra.mxu0 %v99
    %223 = vmatprep.subr.mxu0 %v96
    %224 = vmatpush1.msra.mxu0 %v95
    %225 = vmatprep.subr.mxu0 0.0
    %226 = vmatpush2.msra.mxu0 0.0
    %227 = vmatprep.subr.mxu0 0.0
    %228 = vmatpush2.msra.mxu0 0.0
    %229 = vmatprep.subr.mxu0 0.0
    %230 = vmatpush2.msra.mxu0 0.0
    %231 = vmatprep.subr.mxu0 0.0
    %232 = vmatpush2.msra.mxu0 0.0
    %233 = vmatprep.subr.mxu0 0.0
    %234 = vmatpush2.msra.mxu0 0.0
    %235 = vmatprep.subr.mxu0 0.0
    %236 = vmatpush2.msra.mxu0 0.0
    %237 = vmatprep.subr.mxu0 0.0
    %238 = vmatpush2.msra.mxu0 0.0
    %239 = vmatprep.subr.mxu0 0.0
    %240 = vmatpush2.msra.mxu0 0.0
    %241 = vmatprep.subr.mxu0 0.0
    %242 = vmatpush2.msra.mxu0 0.0
    %243 = vmatprep.subr.mxu0 0.0
    %244 = vmatpush2.msra.mxu0 0.0
    %245 = vmatprep.subr.mxu0 0.0
    %246 = vmatpush2.msra.mxu0 0.0
    %247 = vmatprep.subr.mxu0 0.0
    %248 = vmatpush2.msra.mxu0 0.0
    %249 = vmatprep.subr.mxu0 0.0
    %250 = vmatpush2.msra.mxu0 0.0
    %251 = vmatprep.subr.mxu0 0.0
    %252 = vmatpush2.msra.mxu0 0.0
    %253 = vmatprep.subr.mxu0 0.0
    %254 = vmatpush2.msra.mxu0 0.0
    %255 = vmatprep.subr.mxu0 0.0
    %256 = vmatpush2.msra.mxu0 0.0
    %257 = vmatprep.mubr.f32.mxu0 0.0
    %258 = vmatmul.mubr.f32.gmra.mxu0 %v111
    %v259 = vpop.f32.mrf.mxu0
    %v260 = vadd.f32 %v103, %v259
    %v261 = vpop.f32.mrf.mxu0
    %v262 = vadd.f32 %v103, %v261
    %263 = vmatprep.mubr.f32.mxu0 0.0
    %264 = vmatmul.mubr.f32.gmra.mxu0 %v114
    %v265 = vpop.f32.mrf.mxu0
    %v266 = vadd.f32 %v107, %v265
    %v267 = vpop.f32.mrf.mxu0
    %v268 = vadd.f32 %v107, %v267
    %269 = vdwg.mxu0
    %v270 = vmax.f32 %v183, 0.0
    %v271 = vmax.f32 %v185, 0.0
    %v272 = vmax.f32 %v260, 0.0
    %v273 = vmax.f32 %v262, 0.0
    %v274 = vmax.f32 %v189, 0.0
    %v275 = vmax.f32 %v191, 0.0
    %v276 = vmax.f32 %v266, 0.0
    %v277 = vmax.f32 %v268, 0.0
    %278 = vset.pattern.permute.xlu0 3
    %279 = vperm.xlu0 %278, %v35
    %v280 = vpop.permute.xlu0 %279
    %282 = vset.pattern.permute.xlu0 3
    %283 = vperm.xlu0 %282, %v36
    %v284 = vpop.permute.xlu0 %283
    %v287 = vsel %vm109, %v31, 0
    %v290 = vsel %vm109, %v32, 0
    %292 = vmatprep.subr.mxu0 0.0
    %293 = vmatpush1.msra.mxu0 0.0
    %294 = vmatprep.subr.mxu0 0.0
    %295 = vmatpush1.msra.mxu0 0.0
    %296 = vmatprep.subr.mxu0 0.0
    %297 = vmatpush1.msra.mxu0 0.0
    %298 = vmatprep.subr.mxu0 0.0
    %299 = vmatpush1.msra.mxu0 0.0
    %300 = vmatprep.subr.mxu0 0.0
    %301 = vmatpush1.msra.mxu0 0.0
    %302 = vmatprep.subr.mxu0 0.0
    %303 = vmatpush1.msra.mxu0 0.0
    %304 = vmatprep.subr.mxu0 0.0
    %305 = vmatpush1.msra.mxu0 0.0
    %306 = vmatprep.subr.mxu0 0.0
    %307 = vmatpush1.msra.mxu0 0.0
    %308 = vmatprep.subr.mxu0 0.0
    %309 = vmatpush1.msra.mxu0 0.0
    %310 = vmatprep.subr.mxu0 0.0
    %311 = vmatpush1.msra.mxu0 0.0
    %312 = vmatprep.subr.mxu0 0.0
    %313 = vmatpush1.msra.mxu0 0.0
    %314 = vmatprep.subr.mxu0 0.0
    %315 = vmatpush1.msra.mxu0 0.0
    %316 = vmatprep.subr.mxu0 0.0
    %317 = vmatpush1.msra.mxu0 0.0
    %318 = vmatprep.subr.mxu0 0.0
    %319 = vmatpush1.msra.mxu0 0.0
    %320 = vmatprep.subr.mxu0 %v275
    %321 = vmatpush1.msra.mxu0 %v274
    %322 = vmatprep.subr.mxu0 %v271
    %323 = vmatpush1.msra.mxu0 %v270
    %324 = vmatprep.subr.mxu0 0.0
    %325 = vmatpush2.msra.mxu0 0.0
    %326 = vmatprep.subr.mxu0 0.0
    %327 = vmatpush2.msra.mxu0 0.0
    %328 = vmatprep.subr.mxu0 0.0
    %329 = vmatpush2.msra.mxu0 0.0
    %330 = vmatprep.subr.mxu0 0.0
    %331 = vmatpush2.msra.mxu0 0.0
    %332 = vmatprep.subr.mxu0 0.0
    %333 = vmatpush2.msra.mxu0 0.0
    %334 = vmatprep.subr.mxu0 0.0
    %335 = vmatpush2.msra.mxu0 0.0
    %336 = vmatprep.subr.mxu0 0.0
    %337 = vmatpush2.msra.mxu0 0.0
    %338 = vmatprep.subr.mxu0 0.0
    %339 = vmatpush2.msra.mxu0 0.0
    %340 = vmatprep.subr.mxu0 0.0
    %341 = vmatpush2.msra.mxu0 0.0
    %342 = vmatprep.subr.mxu0 0.0
    %343 = vmatpush2.msra.mxu0 0.0
    %344 = vmatprep.subr.mxu0 0.0
    %345 = vmatpush2.msra.mxu0 0.0
    %346 = vmatprep.subr.mxu0 0.0
    %347 = vmatpush2.msra.mxu0 0.0
    %348 = vmatprep.subr.mxu0 0.0
    %349 = vmatpush2.msra.mxu0 0.0
    %350 = vmatprep.subr.mxu0 0.0
    %351 = vmatpush2.msra.mxu0 0.0
    %352 = vmatprep.subr.mxu0 0.0
    %353 = vmatpush2.msra.mxu0 0.0
    %354 = vmatprep.subr.mxu0 0.0
    %355 = vmatpush2.msra.mxu0 0.0
    %356 = vmatprep.mubr.f32.mxu0 0.0
    %357 = vmatmul.mubr.f32.gmra.mxu0 %v287
    %v358 = vpop.f32.mrf.mxu0
    %v359 = vadd.f32 %v280, %v358
    %v360 = vpop.f32.mrf.mxu0
    %v361 = vadd.f32 %v280, %v360
    %362 = vmatprep.mubr.f32.mxu0 0.0
    %363 = vmatmul.mubr.f32.gmra.mxu0 %v290
    %v364 = vpop.f32.mrf.mxu0
    %v365 = vadd.f32 %v284, %v364
    %v366 = vpop.f32.mrf.mxu0
    %v367 = vadd.f32 %v284, %v366
    %368 = vdwg.mxu0
    %369 = vmatprep.subr.mxu0 0.0
    %370 = vmatpush1.msra.mxu0 0.0
    %371 = vmatprep.subr.mxu0 0.0
    %372 = vmatpush1.msra.mxu0 0.0
    %373 = vmatprep.subr.mxu0 0.0
    %374 = vmatpush1.msra.mxu0 0.0
    %375 = vmatprep.subr.mxu0 0.0
    %376 = vmatpush1.msra.mxu0 0.0
    %377 = vmatprep.subr.mxu0 0.0
    %378 = vmatpush1.msra.mxu0 0.0
    %379 = vmatprep.subr.mxu0 0.0
    %380 = vmatpush1.msra.mxu0 0.0
    %381 = vmatprep.subr.mxu0 0.0
    %382 = vmatpush1.msra.mxu0 0.0
    %383 = vmatprep.subr.mxu0 0.0
    %384 = vmatpush1.msra.mxu0 0.0
    %385 = vmatprep.subr.mxu0 0.0
    %386 = vmatpush1.msra.mxu0 0.0
    %387 = vmatprep.subr.mxu0 0.0
    %388 = vmatpush1.msra.mxu0 0.0
    %389 = vmatprep.subr.mxu0 0.0
    %390 = vmatpush1.msra.mxu0 0.0
    %391 = vmatprep.subr.mxu0 0.0
    %392 = vmatpush1.msra.mxu0 0.0
    %393 = vmatprep.subr.mxu0 0.0
    %394 = vmatpush1.msra.mxu0 0.0
    %395 = vmatprep.subr.mxu0 0.0
    %396 = vmatpush1.msra.mxu0 0.0
    %397 = vmatprep.subr.mxu0 %v277
    %398 = vmatpush1.msra.mxu0 %v276
    %399 = vmatprep.subr.mxu0 %v273
    %400 = vmatpush1.msra.mxu0 %v272
    %401 = vmatprep.subr.mxu0 0.0
    %402 = vmatpush2.msra.mxu0 0.0
    %403 = vmatprep.subr.mxu0 0.0
    %404 = vmatpush2.msra.mxu0 0.0
    %405 = vmatprep.subr.mxu0 0.0
    %406 = vmatpush2.msra.mxu0 0.0
    %407 = vmatprep.subr.mxu0 0.0
    %408 = vmatpush2.msra.mxu0 0.0
    %409 = vmatprep.subr.mxu0 0.0
    %410 = vmatpush2.msra.mxu0 0.0
    %411 = vmatprep.subr.mxu0 0.0
    %412 = vmatpush2.msra.mxu0 0.0
    %413 = vmatprep.subr.mxu0 0.0
    %414 = vmatpush2.msra.mxu0 0.0
    %415 = vmatprep.subr.mxu0 0.0
    %416 = vmatpush2.msra.mxu0 0.0
    %417 = vmatprep.subr.mxu0 0.0
    %418 = vmatpush2.msra.mxu0 0.0
    %419 = vmatprep.subr.mxu0 0.0
    %420 = vmatpush2.msra.mxu0 0.0
    %421 = vmatprep.subr.mxu0 0.0
    %422 = vmatpush2.msra.mxu0 0.0
    %423 = vmatprep.subr.mxu0 0.0
    %424 = vmatpush2.msra.mxu0 0.0
    %425 = vmatprep.subr.mxu0 0.0
    %426 = vmatpush2.msra.mxu0 0.0
    %427 = vmatprep.subr.mxu0 0.0
    %428 = vmatpush2.msra.mxu0 0.0
    %429 = vmatprep.subr.mxu0 0.0
    %430 = vmatpush2.msra.mxu0 0.0
    %431 = vmatprep.subr.mxu0 0.0
    %432 = vmatpush2.msra.mxu0 0.0
    %433 = vmatprep.mubr.f32.mxu0 0.0
    %434 = vmatmul.mubr.f32.gmra.mxu0 %v287
    %v435 = vpop.f32.mrf.mxu0
    %v436 = vadd.f32 %v280, %v435
    %v437 = vpop.f32.mrf.mxu0
    %v438 = vadd.f32 %v280, %v437
    %439 = vmatprep.mubr.f32.mxu0 0.0
    %440 = vmatmul.mubr.f32.gmra.mxu0 %v290
    %v441 = vpop.f32.mrf.mxu0
    %v442 = vadd.f32 %v284, %v441
    %v443 = vpop.f32.mrf.mxu0
    %v444 = vadd.f32 %v284, %v443
    %445 = vdwg.mxu0
    %v446 = vmax.f32 %v359, 0.0
    %v447 = vmax.f32 %v361, 0.0
    %v448 = vmax.f32 %v436, 0.0
    %v449 = vmax.f32 %v438, 0.0
    %v450 = vmax.f32 %v365, 0.0
    %v451 = vmax.f32 %v367, 0.0
    %v452 = vmax.f32 %v442, 0.0
    %v453 = vmax.f32 %v444, 0.0
    %454 = vset.pattern.permute.xlu0 4
    %455 = vperm.xlu0 %454, %v35
    %v456 = vpop.permute.xlu0 %455
    %458 = vset.pattern.permute.xlu0 4
    %459 = vperm.xlu0 %458, %v36
    %v460 = vpop.permute.xlu0 %459
    %v463 = vsel %vm109, %v33, 0
    %v466 = vsel %vm109, %v34, 0
    %468 = vmatprep.subr.mxu0 0.0
    %469 = vmatpush1.msra.mxu0 0.0
    %470 = vmatprep.subr.mxu0 0.0
    %471 = vmatpush1.msra.mxu0 0.0
    %472 = vmatprep.subr.mxu0 0.0
    %473 = vmatpush1.msra.mxu0 0.0
    %474 = vmatprep.subr.mxu0 0.0
    %475 = vmatpush1.msra.mxu0 0.0
    %476 = vmatprep.subr.mxu0 0.0
    %477 = vmatpush1.msra.mxu0 0.0
    %478 = vmatprep.subr.mxu0 0.0
    %479 = vmatpush1.msra.mxu0 0.0
    %480 = vmatprep.subr.mxu0 0.0
    %481 = vmatpush1.msra.mxu0 0.0
    %482 = vmatprep.subr.mxu0 0.0
    %483 = vmatpush1.msra.mxu0 0.0
    %484 = vmatprep.subr.mxu0 0.0
    %485 = vmatpush1.msra.mxu0 0.0
    %486 = vmatprep.subr.mxu0 0.0
    %487 = vmatpush1.msra.mxu0 0.0
    %488 = vmatprep.subr.mxu0 0.0
    %489 = vmatpush1.msra.mxu0 0.0
    %490 = vmatprep.subr.mxu0 0.0
    %491 = vmatpush1.msra.mxu0 0.0
    %492 = vmatprep.subr.mxu0 0.0
    %493 = vmatpush1.msra.mxu0 0.0
    %494 = vmatprep.subr.mxu0 0.0
    %495 = vmatpush1.msra.mxu0 0.0
    %496 = vmatprep.subr.mxu0 %v451
    %497 = vmatpush1.msra.mxu0 %v450
    %498 = vmatprep.subr.mxu0 %v447
    %499 = vmatpush1.msra.mxu0 %v446
    %500 = vmatprep.subr.mxu0 0.0
    %501 = vmatpush2.msra.mxu0 0.0
    %502 = vmatprep.subr.mxu0 0.0
    %503 = vmatpush2.msra.mxu0 0.0
    %504 = vmatprep.subr.mxu0 0.0
    %505 = vmatpush2.msra.mxu0 0.0
    %506 = vmatprep.subr.mxu0 0.0
    %507 = vmatpush2.msra.mxu0 0.0
    %508 = vmatprep.subr.mxu0 0.0
    %509 = vmatpush2.msra.mxu0 0.0
    %510 = vmatprep.subr.mxu0 0.0
    %511 = vmatpush2.msra.mxu0 0.0
    %512 = vmatprep.subr.mxu0 0.0
    %513 = vmatpush2.msra.mxu0 0.0
    %514 = vmatprep.subr.mxu0 0.0
    %515 = vmatpush2.msra.mxu0 0.0
    %516 = vmatprep.subr.mxu0 0.0
    %517 = vmatpush2.msra.mxu0 0.0
    %518 = vmatprep.subr.mxu0 0.0
    %519 = vmatpush2.msra.mxu0 0.0
    %520 = vmatprep.subr.mxu0 0.0
    %521 = vmatpush2.msra.mxu0 0.0
    %522 = vmatprep.subr.mxu0 0.0
    %523 = vmatpush2.msra.mxu0 0.0
    %524 = vmatprep.subr.mxu0 0.0
    %525 = vmatpush2.msra.mxu0 0.0
    %526 = vmatprep.subr.mxu0 0.0
    %527 = vmatpush2.msra.mxu0 0.0
    %528 = vmatprep.subr.mxu0 0.0
    %529 = vmatpush2.msra.mxu0 0.0
    %530 = vmatprep.subr.mxu0 0.0
    %531 = vmatpush2.msra.mxu0 0.0
    %532 = vmatprep.mubr.f32.mxu0 0.0
    %533 = vmatmul.mubr.f32.gmra.mxu0 %v463
    %v534 = vpop.f32.mrf.mxu0
    %v535 = vadd.f32 %v456, %v534
    %v536 = vpop.f32.mrf.mxu0
    %v537 = vadd.f32 %v456, %v536
    %538 = vmatprep.mubr.f32.mxu0 0.0
    %539 = vmatmul.mubr.f32.gmra.mxu0 %v466
    %v540 = vpop.f32.mrf.mxu0
    %v541 = vadd.f32 %v460, %v540
    %v542 = vpop.f32.mrf.mxu0
    %v543 = vadd.f32 %v460, %v542
    %544 = vdwg.mxu0
    %545 = vmatprep.subr.mxu0 0.0
    %546 = vmatpush1.msra.mxu0 0.0
    %547 = vmatprep.subr.mxu0 0.0
    %548 = vmatpush1.msra.mxu0 0.0
    %549 = vmatprep.subr.mxu0 0.0
    %550 = vmatpush1.msra.mxu0 0.0
    %551 = vmatprep.subr.mxu0 0.0
    %552 = vmatpush1.msra.mxu0 0.0
    %553 = vmatprep.subr.mxu0 0.0
    %554 = vmatpush1.msra.mxu0 0.0
    %555 = vmatprep.subr.mxu0 0.0
    %556 = vmatpush1.msra.mxu0 0.0
    %557 = vmatprep.subr.mxu0 0.0
    %558 = vmatpush1.msra.mxu0 0.0
    %559 = vmatprep.subr.mxu0 0.0
    %560 = vmatpush1.msra.mxu0 0.0
    %561 = vmatprep.subr.mxu0 0.0
    %562 = vmatpush1.msra.mxu0 0.0
    %563 = vmatprep.subr.mxu0 0.0
    %564 = vmatpush1.msra.mxu0 0.0
    %565 = vmatprep.subr.mxu0 0.0
    %566 = vmatpush1.msra.mxu0 0.0
    %567 = vmatprep.subr.mxu0 0.0
    %568 = vmatpush1.msra.mxu0 0.0
    %569 = vmatprep.subr.mxu0 0.0
    %570 = vmatpush1.msra.mxu0 0.0
    %571 = vmatprep.subr.mxu0 0.0
    %572 = vmatpush1.msra.mxu0 0.0
    %573 = vmatprep.subr.mxu0 %v453
    %574 = vmatpush1.msra.mxu0 %v452
    %575 = vmatprep.subr.mxu0 %v449
    %576 = vmatpush1.msra.mxu0 %v448
    %577 = vmatprep.subr.mxu0 0.0
    %578 = vmatpush2.msra.mxu0 0.0
    %579 = vmatprep.subr.mxu0 0.0
    %580 = vmatpush2.msra.mxu0 0.0
    %581 = vmatprep.subr.mxu0 0.0
    %582 = vmatpush2.msra.mxu0 0.0
    %583 = vmatprep.subr.mxu0 0.0
    %584 = vmatpush2.msra.mxu0 0.0
    %585 = vmatprep.subr.mxu0 0.0
    %586 = vmatpush2.msra.mxu0 0.0
    %587 = vmatprep.subr.mxu0 0.0
    %588 = vmatpush2.msra.mxu0 0.0
    %589 = vmatprep.subr.mxu0 0.0
    %590 = vmatpush2.msra.mxu0 0.0
    %591 = vmatprep.subr.mxu0 0.0
    %592 = vmatpush2.msra.mxu0 0.0
    %593 = vmatprep.subr.mxu0 0.0
    %594 = vmatpush2.msra.mxu0 0.0
    %595 = vmatprep.subr.mxu0 0.0
    %596 = vmatpush2.msra.mxu0 0.0
    %597 = vmatprep.subr.mxu0 0.0
    %598 = vmatpush2.msra.mxu0 0.0
    %599 = vmatprep.subr.mxu0 0.0
    %600 = vmatpush2.msra.mxu0 0.0
    %601 = vmatprep.subr.mxu0 0.0
    %602 = vmatpush2.msra.mxu0 0.0
    %603 = vmatprep.subr.mxu0 0.0
    %604 = vmatpush2.msra.mxu0 0.0
    %605 = vmatprep.subr.mxu0 0.0
    %606 = vmatpush2.msra.mxu0 0.0
    %607 = vmatprep.subr.mxu0 0.0
    %608 = vmatpush2.msra.mxu0 0.0
    %609 = vmatprep.mubr.f32.mxu0 0.0
    %610 = vmatmul.mubr.f32.gmra.mxu0 %v463
    %v611 = vpop.f32.mrf.mxu0
    %v612 = vadd.f32 %v456, %v611
    %v613 = vpop.f32.mrf.mxu0
    %v614 = vadd.f32 %v456, %v613
    %615 = vmatprep.mubr.f32.mxu0 0.0
    %616 = vmatmul.mubr.f32.gmra.mxu0 %v466
    %v617 = vpop.f32.mrf.mxu0
    %v618 = vadd.f32 %v460, %v617
    %v619 = vpop.f32.mrf.mxu0
    %v620 = vadd.f32 %v460, %v619
    %621 = vdwg.mxu0
    %v622 = vmax.f32 %v535, 0.0
    %v623 = vmax.f32 %v537, 0.0
    %v624 = vmax.f32 %v612, 0.0
    %v625 = vmax.f32 %v614, 0.0
    %v626 = vmax.f32 %v541, 0.0
    %v627 = vmax.f32 %v543, 0.0
    %v628 = vmax.f32 %v618, 0.0
    %v629 = vmax.f32 %v620, 0.0
    %630 = vset.pattern.permute.xlu0 5
    %631 = vperm.xlu0 %630, %v35
    %v632 = vpop.permute.xlu0 %631
    %634 = vset.pattern.permute.xlu0 5
    %635 = vperm.xlu0 %634, %v36
    %v636 = vpop.permute.xlu0 %635
    %v638 = vmul.f32 %v632, %v622
    %v639 = vmul.f32 %v632, %v623
    %v640 = vmul.f32 %v632, %v624
    %v641 = vmul.f32 %v632, %v625
    %v642 = vmul.f32 %v636, %v626
    %v643 = vmul.f32 %v636, %v627
    %v644 = vmul.f32 %v636, %v628
    %v645 = vmul.f32 %v636, %v629
    %v646 = vadd.f32 %v638, %v642
    %v647 = vrot.slane %v646, 4
    %v648 = vadd.f32 %v646, %v647
    %v649 = vrot.slane %v648, 2
    %v650 = vadd.f32 %v648, %v649
    %v651 = vrot.slane %v650, 1
    %v652 = vadd.f32 %v650, %v651
    %v653 = vadd.f32 %v639, %v643
    %v654 = vrot.slane %v653, 4
    %v655 = vadd.f32 %v653, %v654
    %v656 = vrot.slane %v655, 2
    %v657 = vadd.f32 %v655, %v656
    %v658 = vrot.slane %v657, 1
    %v659 = vadd.f32 %v657, %v658
    %v660 = vadd.f32 %v640, %v644
    %v661 = vrot.slane %v660, 4
    %v662 = vadd.f32 %v660, %v661
    %v663 = vrot.slane %v662, 2
    %v664 = vadd.f32 %v662, %v663
    %v665 = vrot.slane %v664, 1
    %v666 = vadd.f32 %v664, %v665
    %v667 = vadd.f32 %v641, %v645
    %v668 = vrot.slane %v667, 4
    %v669 = vadd.f32 %v667, %v668
    %v670 = vrot.slane %v669, 2
    %v671 = vadd.f32 %v669, %v670
    %v672 = vrot.slane %v671, 1
    %v673 = vadd.f32 %v671, %v672
    %674 = vset.pattern.permute.xlu0 6
    %675 = vperm.xlu0 %674, %v35
    %v676 = vpop.permute.xlu0 %675
    %v678 = vadd.f32 %v652, %v676
    %v679 = vadd.f32 %v659, %v676
    %v680 = vadd.f32 %v666, %v676
    %v681 = vadd.f32 %v673, %v676
    %v686 = vcombine.low %v678, %v679
    %v687 = vcombine.low %v680, %v681
    %v689 = vunpack.c.l.s4 1966171168
    %v690 = vunpack.c.0.s8 %v689
    %v691 = vlaneseq
    %v692 = vshrl.u32 %v691, 7
    %v693 = vsub.s32 %v690, %v692
    %v694 = vrot.slane %v686, %v693
    %v696 = vunpack.c.l.s4 1966171168
    %v697 = vunpack.c.0.s8 %v696
    %v698 = vlaneseq
    %v699 = vshrl.u32 %v698, 7
    %v700 = vsub.s32 %v697, %v699
    %v701 = vrot.slane %v687, %v700
    %v702 = vcombine.low %v694, %v701
    %v704 = vunpack.c.l.s4 1966171168
    %v705 = vunpack.c.0.s8 %v704
    %v706 = vlaneseq
    %v707 = vshrl.u32 %v706, 7
    %v708 = vsub.s32 %v705, %v707
    %v709 = vrot.slane %v702, %v708
    %v711 = vlaneseq
    %vm712 = vcmp.ge.s32.totalorder %v711, 0
    %vm713 = vcmp.lt.s32.totalorder %v711, 512
    %vm714 = vmand %vm712, %vm713
    %715 = vst.msk [vmem:[#allocation5] sm:$0xf] %vm714, %v709
    // Predicated region
    $region18: #{tpu_custom_call.1} parent=1 // pred_check
      _
    $region19: #{tpu_custom_call.1} parent=1 // pred_check_branch
      %717 = sbr.rel (0) target = $region21
    $region20: #{tpu_custom_call.1} parent=1 // pred_region
      %s719 = ssub.s32 64, 64
      %720 = vsyncadd [#allocation4], %s719
      %s722 = sshll.u32 [#allocation5], 4
      %s723 = int_to_ptr.vmem [resolvable:$true] %s722
      %725 = dma.vmem_to_hbm [thread:$0]  %s723, 64, %s3, [#allocation4]
    $region21: #{tpu_custom_call.1} parent=1 // pred_fallthru
      _
    // Predicated region
    $region22: #{tpu_custom_call.1} parent=1 // pred_check
      _
    $region23: #{tpu_custom_call.1} parent=1 // pred_check_branch
      %727 = sbr.rel (0) target = $region25
    $region24: #{tpu_custom_call.1} parent=1 // pred_region
      %728 = dma.done [#allocation4], 64
    $region25: #{tpu_custom_call.1} parent=1 // pred_fallthru
      _
    %729 = vsyncpa [#allocation3], 1
    %730 = vsyncpa [#allocation4], 1

</llo_original>
